<compile_context>
chip_gen: v7x
topology: tpu7x:2x2x1
jax: 0.10.0
libtpu: 0.0.40
codegen_flags: <defaults>
</compile_context>

<pallas_src>
import functools
import numpy as np
import jax
import jax.numpy as jnp
from jax import lax
from jax.experimental import pallas as pl
from jax.experimental.pallas import tpu as pltpu


# ---------------------------- tiling constants ----------------------------

_MAX_TM = 512    # im2col rows per tile (multiple of 8)
_MAX_TN = 256    # output channels per tile (multiple of 128)
_MAX_TK = 1024   # contraction chunk; K <= this -> single dot, no reduction axis


def _round_up(x, d):
    return (x + d - 1) // d * d


def _cdiv(a, b):
    return (a + b - 1) // b


# ---------------------------- Pallas kernels ----------------------------

def _mm_kernel(x_ref, w_ref, b_ref, o_ref, *, relu):
    """out = relu(x @ w + b); whole contraction in one MXU dot (no scratch)."""
    acc = jnp.dot(x_ref[...], w_ref[...], preferred_element_type=jnp.float32)
    out = acc + b_ref[...]
    if relu:
        out = jnp.maximum(out, 0.0)
    o_ref[...] = out.astype(o_ref.dtype)


def _mm_kernel_ksplit(x_ref, w_ref, b_ref, o_ref, acc_ref, *, relu, nk):
    """K split over the trailing ("arbitrary") grid axis, f32 VMEM accumulator."""
    kk = pl.program_id(2)

    @pl.when(kk == 0)
    def _():
        acc_ref[...] = jnp.zeros_like(acc_ref)

    acc_ref[...] += jnp.dot(x_ref[...], w_ref[...],
                            preferred_element_type=jnp.float32)

    @pl.when(kk == nk - 1)
    def _():
        out = acc_ref[...] + b_ref[...]
        if relu:
            out = jnp.maximum(out, 0.0)
        o_ref[...] = out.astype(o_ref.dtype)


def _direct3x3_kernel(x_ref, w_ref, b_ref, *rest, relu, has_residual, wq):
    """Fused direct 3x3/s1/p1 conv on a row-flattened padded image.

    x_ref : (rows, Cin) bf16 -- zero-padded image flattened row-major, so the
            tap (i, j) contribution to output row q is x[q + i*wq + j].
    w_ref : (9, Cin, tn) bf16 (BN scale folded).
    Epilogue (bias, optional residual, relu) runs in f32 in-kernel.
    """
    if has_residual:
        r_ref, o_ref = rest
    else:
        (o_ref,) = rest
    mq, tn = o_ref.shape
    x = x_ref[...]
    w = w_ref[...]
    acc = jnp.zeros((mq, tn), jnp.float32)
    for i in range(3):
        for j in range(3):
            off = i * wq + j
            acc = acc + jnp.dot(x[off:off + mq, :], w[i * 3 + j],
                                preferred_element_type=jnp.float32)
    out = acc + b_ref[...]
    if has_residual:
        out = out + r_ref[...]
    if relu:
        out = jnp.maximum(out, 0.0)
    o_ref[...] = out.astype(o_ref.dtype)


def _maxpool_kernel(ee_ref, eo_ref, oe_ref, oo_ref, o_ref):
    """3x3/s2/p1 max pool: 9-way max over even/odd parity slabs, input dtype."""
    ho, wo = o_ref.shape[0], o_ref.shape[1]
    ee = ee_ref[...]
    eo = eo_ref[...]
    oe = oe_ref[...]
    oo = oo_ref[...]
    mx = ee[:ho, :wo]
    mx = jnp.maximum(mx, ee[:ho, 1:wo + 1])
    mx = jnp.maximum(mx, ee[1:ho + 1, :wo])
    mx = jnp.maximum(mx, ee[1:ho + 1, 1:wo + 1])
    mx = jnp.maximum(mx, eo[:ho, :wo])
    mx = jnp.maximum(mx, eo[1:ho + 1, :wo])
    mx = jnp.maximum(mx, oe[:ho, :wo])
    mx = jnp.maximum(mx, oe[:ho, 1:wo + 1])
    mx = jnp.maximum(mx, oo[:ho, :wo])
    o_ref[...] = mx.astype(o_ref.dtype)


# ---------------------------- conv wrappers ----------------------------

def _conv_matmul(x, w_oihw, scale, bias, *, stride, padding, relu):
    """General conv via folded-K im2col + tiled MXU matmul (used for strided
    convs and 1x1 convs). matmul / bias / relu run inside the kernel."""
    cout, cin, kh, kw = w_oihw.shape
    n, h, w, _ = x.shape
    ho = (h + 2 * padding - kh) // stride + 1
    wo = (w + 2 * padding - kw) // stride + 1
    m = n * ho * wo
    k = kh * kw * cin

    # im2col with the taps folded into the contraction axis: LHS is (M, K).
    xb = x.astype(jnp.bfloat16)
    if padding:
        xb = jnp.pad(xb, ((0, 0), (padding, padding), (padding, padding), (0, 0)))
    cols = []
    for i in range(kh):
        for j in range(kw):
            patch = lax.slice(
                xb, (0, i, j, 0),
                (n, i + (ho - 1) * stride + 1, j + (wo - 1) * stride + 1, cin),
                (1, stride, stride, 1))
            cols.append(patch.reshape(m, cin))
    lhs = jnp.concatenate(cols, axis=1) if len(cols) > 1 else cols[0]

    # K tiling: pad to a lane-dense multiple of 128; single MXU dot when it
    # fits one chunk, otherwise split K over the trailing grid axis.
    k128 = _cdiv(k, 128)
    if k128 * 128 <= _MAX_TK:
        nk = 1
        k_pad = k128 * 128
        tk = k_pad
    else:
        nk = _cdiv(k128 * 128, _MAX_TK)
        k128 = _round_up(k128, nk)
        k_pad = k128 * 128
        tk = k_pad // nk

    # M / N tiling; Cout padded to a multiple of 128 -> lane-dense stores.
    tm = min(_MAX_TM, _round_up(m, 8))
    m_pad = _round_up(m, tm)
    cout_pad = _round_up(cout, 128)
    tn = min(_MAX_TN, cout_pad)
    gm, gn = m_pad // tm, cout_pad // tn
    # v7x megacore: keep >=2 blocks on a parallel axis whenever possible.
    if gm == 1 and gn == 1:
        if cout_pad >= 256:
            tn //= 2
            gn = 2
        elif tm % 16 == 0:
            tm //= 2
            gm = m_pad // tm

    # single pad covering both the M and K zero-extension
    if m_pad != m or k_pad != k:
        lhs = jnp.pad(lhs, ((0, m_pad - m), (0, k_pad - k)))

    # weights: fold BN scale, (K, Cout) row order matches tap-major im2col.
    wmat = (jnp.transpose(w_oihw, (2, 3, 1, 0))
            * scale[None, None, None, :]).reshape(k, cout)
    wmat = jnp.pad(wmat, ((0, k_pad - k), (0, cout_pad - cout))).astype(jnp.bfloat16)
    b2d = jnp.pad(bias.reshape(1, cout).astype(jnp.float32),
                  ((0, 0), (0, cout_pad - cout)))

    flops = 2 * m_pad * cout_pad * k_pad
    bytes_accessed = ((m_pad * k_pad + k_pad * cout_pad) * 2
                      + m_pad * cout_pad * 4 + cout_pad * 4)

    if nk == 1:
        kern = functools.partial(_mm_kernel, relu=relu)
        grid = (gm, gn)
        in_specs = [pl.BlockSpec((tm, tk), lambda i, j: (i, 0)),
                    pl.BlockSpec((tk, tn), lambda i, j: (0, j)),
                    pl.BlockSpec((1, tn), lambda i, j: (0, j))]
        out_spec = pl.BlockSpec((tm, tn), lambda i, j: (i, j))
        scratch = []
        sem = ("parallel", "parallel")
    else:
        kern = functools.partial(_mm_kernel_ksplit, relu=relu, nk=nk)
        grid = (gm, gn, nk)
        in_specs = [pl.BlockSpec((tm, tk), lambda i, j, kk: (i, kk)),
                    pl.BlockSpec((tk, tn), lambda i, j, kk: (kk, j)),
                    pl.BlockSpec((1, tn), lambda i, j, kk: (0, j))]
        out_spec = pl.BlockSpec((tm, tn), lambda i, j, kk: (i, j))
        scratch = [pltpu.VMEM((tm, tn), jnp.float32)]
        sem = ("parallel", "parallel", "arbitrary")

    out = pl.pallas_call(
        kern,
        out_shape=jax.ShapeDtypeStruct((m_pad, cout_pad), jnp.float32),
        grid=grid,
        in_specs=in_specs,
        out_specs=out_spec,
        scratch_shapes=scratch,
        compiler_params=pltpu.CompilerParams(dimension_semantics=sem),
        cost_estimate=pl.CostEstimate(flops=int(flops), transcendentals=0,
                                      bytes_accessed=int(bytes_accessed)),
    )(lhs, wmat, b2d)
    return out[:m, :cout].reshape(n, ho, wo, cout)


def _conv3x3_s1_direct(x, w_oihw, scale, bias, *, residual, relu):
    """Fused direct 3x3/s1/p1 conv: no HBM im2col, per-batch grid blocks,
    9 in-kernel tap matmuls, BN bias + optional residual + relu epilogue."""
    cout, cin, _, _ = w_oihw.shape
    n, h, w, _ = x.shape
    wq = w + 2                       # flattened row width (2 discarded columns)
    mq = h * wq
    mq_pad = _round_up(mq, 8)
    rows_needed = 2 * wq + 2 + mq_pad        # last tap offset + slice length
    cout_pad = _round_up(cout, 128)

    # zero-padded image flattened row-major (single ~1x copy of the activation)
    xp = jnp.pad(x.astype(jnp.bfloat16), ((0, 0), (1, 1), (1, 1), (0, 0)))
    xf = xp.reshape(n, (h + 2) * wq, cin)
    extra = max(0, rows_needed - (h + 2) * wq)
    if extra:
        xf = jnp.pad(xf, ((0, 0), (0, extra), (0, 0)))

    # folded-BN weights (9, Cin, Cout_pad) bf16; bias f32 (zero-padded columns)
    wf = jnp.transpose(w_oihw, (2, 3, 1, 0)) * scale[None, None, None, :]
    wf = wf.reshape(9, cin, cout)
    wf = jnp.pad(wf, ((0, 0), (0, 0), (0, cout_pad - cout))).astype(jnp.bfloat16)
    b2d = jnp.pad(bias.reshape(1, cout).astype(jnp.float32),
                  ((0, 0), (0, cout_pad - cout)))

    tn = min(_MAX_TN, cout_pad)
    gn = cout_pad // tn

    operands = [xf, wf, b2d]
    in_specs = [
        pl.BlockSpec((pl.Squeezed(), rows_needed if extra else (h + 2) * wq, cin),
                     lambda b, j: (b, 0, 0)),
        pl.BlockSpec((9, cin, tn), lambda b, j: (0, 0, j)),
        pl.BlockSpec((1, tn), lambda b, j: (0, j)),
    ]
    has_res = residual is not None
    if has_res:
        r = jnp.pad(residual.astype(jnp.float32),
                    ((0, 0), (0, 0), (0, 2), (0, cout_pad - cout)))
        r = r.reshape(n, mq, cout_pad)
        if mq_pad != mq:
            r = jnp.pad(r, ((0, 0), (0, mq_pad - mq), (0, 0)))
        operands.append(r)
        in_specs.append(pl.BlockSpec((pl.Squeezed(), mq_pad, tn),
                                     lambda b, j: (b, 0, j)))

    flops = 2 * n * mq_pad * cin * cout_pad * 9
    bytes_accessed = (int(xf.size) * 2 + int(wf.size) * 2
                      + n * mq_pad * cout_pad * 4 * (2 if has_res else 1))

    out = pl.pallas_call(
        functools.partial(_direct3x3_kernel, relu=relu, has_residual=has_res,
                          wq=wq),
        out_shape=jax.ShapeDtypeStruct((n, mq_pad, cout_pad), jnp.float32),
        grid=(n, gn),
        in_specs=in_specs,
        out_specs=pl.BlockSpec((pl.Squeezed(), mq_pad, tn),
                               lambda b, j: (b, 0, j)),
        compiler_params=pltpu.CompilerParams(
            dimension_semantics=("parallel", "parallel")),
        cost_estimate=pl.CostEstimate(flops=int(flops), transcendentals=0,
                                      bytes_accessed=int(bytes_accessed)),
    )(*operands)
    return out[:, :mq].reshape(n, h, wq, cout_pad)[:, :, :w, :cout]


def conv_bn_act(x, w_oihw, scale, bias, *, stride, padding, residual=None,
                relu=False):
    """NHWC conv (PyTorch OIHW weights) + folded-BN affine + residual/relu."""
    _, _, kh, kw = w_oihw.shape
    if kh == 3 and kw == 3 and stride == 1 and padding == 1:
        return _conv3x3_s1_direct(x, w_oihw, scale, bias,
                                  residual=residual, relu=relu)
    assert residual is None, "residual fusion only used on 3x3/s1 convs here"
    return _conv_matmul(x, w_oihw, scale, bias, stride=stride,
                        padding=padding, relu=relu)


# ---------------------------- maxpool wrapper ----------------------------

def maxpool_3x3_s2(x):
    """MaxPool2d(kernel=3, stride=2, padding=1) on NHWC (even H, W)."""
    n, h, w, c = x.shape
    assert h % 2 == 0 and w % 2 == 0, "resnet feature maps have even H/W here"
    ho, wo = h // 2, w // 2
    xp = jnp.pad(x, ((0, 0), (1, 1), (1, 1), (0, 0)),
                 constant_values=float("-inf"))
    # even/odd parity slabs, each (N, ho+1, wo+1, C): ~1x input HBM traffic
    ee = xp[:, 0::2, 0::2, :]
    eo = xp[:, 0::2, 1::2, :]
    oe = xp[:, 1::2, 0::2, :]
    oo = xp[:, 1::2, 1::2, :]

    spec_in = pl.BlockSpec((pl.Squeezed(), ho + 1, wo + 1, c),
                           lambda b: (b, 0, 0, 0))
    out = pl.pallas_call(
        _maxpool_kernel,
        out_shape=jax.ShapeDtypeStruct((n, ho, wo, c), x.dtype),
        grid=(n,),
        in_specs=[spec_in, spec_in, spec_in, spec_in],
        out_specs=pl.BlockSpec((pl.Squeezed(), ho, wo, c),
                               lambda b: (b, 0, 0, 0)),
        compiler_params=pltpu.CompilerParams(
            dimension_semantics=("parallel",)),
    )(ee, eo, oe, oo)
    return out


# ---------------------------- parameters (deterministic synthetic init) ----------------------------

def _init_conv(key, cout, cin, kh, kw):
    fan_in = cin * kh * kw
    return (jax.random.normal(key, (cout, cin, kh, kw), jnp.float32)
            * np.float32(1.0 / np.sqrt(fan_in)))


def _init_bn(key, c, eps=1e-5):
    k1, k2, k3, k4 = jax.random.split(key, 4)
    gamma = 1.0 + 0.1 * jax.random.normal(k1, (c,), jnp.float32)
    beta = 0.1 * jax.random.normal(k2, (c,), jnp.float32)
    mean = 0.1 * jax.random.normal(k3, (c,), jnp.float32)
    var = 1.0 + 0.1 * jax.random.uniform(k4, (c,), jnp.float32)
    scale = gamma / jnp.sqrt(var + eps)
    bias = beta - mean * scale
    return scale, bias


def _init_basic_block(key, cin, cout, stride):
    keys = jax.random.split(key, 6)
    p = {
        'stride': stride,
        'conv1': _init_conv(keys[0], cout, cin, 3, 3),
        'bn1': _init_bn(keys[1], cout),
        'conv2': _init_conv(keys[2], cout, cout, 3, 3),
        'bn2': _init_bn(keys[3], cout),
    }
    if stride != 1 or cin != cout:
        p['down_conv'] = _init_conv(keys[4], cout, cin, 1, 1)
        p['down_bn'] = _init_bn(keys[5], cout)
    return p


def init_params(key, in_channels, n_blocks=4):
    # resnet18 layer configs: (cin, cout, stride) per BasicBlock
    layer_cfgs = [
        [(64, 64, 1), (64, 64, 1)],      # layer1
        [(64, 128, 2), (128, 128, 1)],   # layer2
        [(128, 256, 2), (256, 256, 1)],  # layer3
        [(256, 512, 2), (512, 512, 1)],  # layer4
    ]
    n_layers = max(0, n_blocks - 1)      # block 1 is the (parameter-free) maxpool
    keys = jax.random.split(key, 1 + max(1, n_layers))
    params = {'input_conv': _init_conv(keys[0], 64, in_channels, 7, 7),
              'layers': []}
    for li in range(n_layers):
        bkeys = jax.random.split(keys[1 + li], len(layer_cfgs[li]))
        params['layers'].append([
            _init_basic_block(bk, cin, cout, s)
            for bk, (cin, cout, s) in zip(bkeys, layer_cfgs[li])])
    return params


# ---------------------------- model forward ----------------------------

def basic_block(x, p):
    # TODO(synk): a whole-BasicBlock single pallas_call fusion (conv1 +
    #             downsample + conv2 + residual) would remove per-call glue at
    #             these tiny resolutions; kept as separate fused convs here.
    s = p['stride']
    out = conv_bn_act(x, p['conv1'], *p['bn1'], stride=s, padding=1, relu=True)
    if 'down_conv' in p:
        identity = conv_bn_act(x, p['down_conv'], *p['down_bn'],
                               stride=s, padding=0, relu=False)
    else:
        identity = x
    # second conv: BN + residual add + relu fused into the direct-conv kernel
    out = conv_bn_act(out, p['conv2'], *p['bn2'], stride=1, padding=1,
                      residual=identity, relu=True)
    return out


def resnet_forward(x_nchw, params, n_blocks=4):
    """Mirrors Resnet.forward: returns (x, F) with NCHW float32 tensors."""
    x = jnp.transpose(x_nchw, (0, 2, 3, 1))                      # NCHW -> NHWC
    c_out0 = params['input_conv'].shape[0]
    # self.input conv: no BN, no relu (resnet18's bn1/relu are skipped)
    x = conv_bn_act(x, params['input_conv'],
                    jnp.ones((c_out0,), jnp.float32),
                    jnp.zeros((c_out0,), jnp.float32),
                    stride=2, padding=3, relu=False)
    feats = []
    stages = [('maxpool', None)] + [('layer', lp) for lp in params['layers']]
    for kind, lp in stages[:n_blocks]:
        if kind == 'maxpool':
            x = maxpool_3x3_s2(x)
        else:
            for bp in lp:
                x = basic_block(x, bp)
        feats.append(x)
    to_nchw = lambda t: jnp.transpose(t, (0, 3, 1, 2)).astype(jnp.float32)
    return to_nchw(x), [to_nchw(f) for f in feats]


# ---------------------------- demo ----------------------------

if __name__ == "__main__":
    key = jax.random.PRNGKey(0)
    kp, kx = jax.random.split(key)

    in_channels, n_blocks = 4, 4
    params = init_params(kp, in_channels, n_blocks)
    x = jax.random.normal(kx, (2, in_channels, 16, 16), jnp.float32)  # NCHW

    out, feats = resnet_forward(x, params, n_blocks=n_blocks)
    out = jax.block_until_ready(out)
    for f in feats:
        jax.block_until_ready(f)

    # sanity: expected shapes for 16x16 input
    assert out.shape == (2, 256, 1, 1), out.shape
    assert [tuple(f.shape) for f in feats] == [
        (2, 64, 4, 4), (2, 64, 4, 4), (2, 128, 2, 2), (2, 256, 1, 1)]
    assert bool(jnp.all(jnp.isfinite(out)))
    print("KERNEL_OK")
</pallas_src>

<mosaic_0001>
module attributes {stable_mosaic.version = 11 : i64} {
  func.func @_mm_kernel(%arg0: i32, %arg1: i32, %arg2: memref<64x256xbf16, #tpu.memory_space<vmem>>, %arg3: memref<256x128xbf16, #tpu.memory_space<vmem>>, %arg4: memref<1x128xf32, #tpu.memory_space<vmem>>, %arg5: memref<64x128xf32, #tpu.memory_space<vmem>>) attributes {dimension_semantics = [#tpu.dimension_semantics<parallel>, #tpu.dimension_semantics<parallel>], iteration_bounds = array<i64: 2, 1>, scalar_prefetch = 0 : i64, scratch_operands = 0 : i64, tpu.core_type = #tpu.core_type<tc>, window_params = [{transform_indices = @transform_0, window_bounds = array<i64: 64, 256>}, {transform_indices = @transform_1, window_bounds = array<i64: 256, 128>}, {transform_indices = @transform_2, window_bounds = array<i64: 1, 128>}, {transform_indices = @transform_3, window_bounds = array<i64: 64, 128>}]} {
    %c0 = arith.constant 0 : index
    %c0_0 = arith.constant 0 : index
    %0 = vector.load %arg2[%c0, %c0_0] : memref<64x256xbf16, #tpu.memory_space<vmem>>, vector<64x256xbf16>
    %c0_1 = arith.constant 0 : index
    %c0_2 = arith.constant 0 : index
    %1 = vector.load %arg3[%c0_1, %c0_2] : memref<256x128xbf16, #tpu.memory_space<vmem>>, vector<256x128xbf16>
    %cst = arith.constant dense<0.000000e+00> : vector<64x128xf32>
    %2 = tpu.matmul %0, %1, %cst {dimension_numbers = #tpu.dot_dimension_numbers<[1], [0], [0], [1], [0, 0, 1, 1], [], []>} : vector<64x256xbf16>, vector<256x128xbf16>, vector<64x128xf32> -> vector<64x128xf32>
    %c0_3 = arith.constant 0 : index
    %c0_4 = arith.constant 0 : index
    %3 = vector.load %arg4[%c0_3, %c0_4] : memref<1x128xf32, #tpu.memory_space<vmem>>, vector<1x128xf32>
    %4 = vector.broadcast %3 : vector<1x128xf32> to vector<64x128xf32>
    %5 = arith.addf %2, %4 : vector<64x128xf32>
    %c0_5 = arith.constant 0 : index
    %c0_6 = arith.constant 0 : index
    %6 = vector.load %arg5[%c0_5, %c0_6] : memref<64x128xf32, #tpu.memory_space<vmem>>, vector<64x128xf32>
    tpu.vector_store %arg5[%c0_5, %c0_6], %5 {strides = array<i32>} : memref<64x128xf32, #tpu.memory_space<vmem>>, vector<64x128xf32>,
    return
  }
  func.func @transform_0(%arg0: i32, %arg1: i32) -> (i32, i32) {
    %c0_i32 = arith.constant 0 : i32
    %c0_i32_0 = arith.constant 0 : i32
    return %arg0, %c0_i32 : i32, i32
  }
  func.func @transform_1(%arg0: i32, %arg1: i32) -> (i32, i32) {
    %c0_i32 = arith.constant 0 : i32
    %c0_i32_0 = arith.constant 0 : i32
    return %c0_i32, %arg1 : i32, i32
  }
  func.func @transform_2(%arg0: i32, %arg1: i32) -> (i32, i32) {
    %c0_i32 = arith.constant 0 : i32
    %c0_i32_0 = arith.constant 0 : i32
    return %c0_i32, %arg1 : i32, i32
  }
  func.func @transform_3(%arg0: i32, %arg1: i32) -> (i32, i32) {
    %c0_i32 = arith.constant 0 : i32
    return %arg0, %arg1 : i32, i32
  }
}

</mosaic_0001>

<llo_original>
// kernel: tpu_custom_call.1
$region0: #{tpu_custom_call.1}
  #allocation0 [shape = 'u32[]', space=smem, size = 0x4, offset = 0x4, fixed_abs, tag = 'smem constant byte address 0x4 - core index']
  #allocation1 [shape = 'u32[144,128]{1,0:T(1,128)}', space=vmem, size = 0x12000, scoped, tag = 'internal scratch']
  %s0 = inlined_call_operand.hbm [shape: bf16[128,256], index: 0, kind: input, shape index: {}]
  %s1 = inlined_call_operand.hbm [shape: bf16[256,128], index: 1, kind: input, shape index: {}]
  %s2 = inlined_call_operand.vmem [shape: f32[1,128], index: 2, kind: input, shape index: {}]
  %s3 = inlined_call_operand.hbm [shape: f32[128,128], index: 3, kind: output, shape index: {}]
  %s4 = sld [smem:[#allocation0]]
  $region53: #{tpu_custom_call.1} parent=0
    _
  %s6 = ssub.s32 1, %s4
  %s7 = scalar_select 0, %s6, %s4
  $region1: #{tpu_custom_call.1} parent=0
    #allocation2 [shape = 'u8[65536]{0}', space=vmem, size = 0x10000, scoped, tag = 'input window, operand 0']
    #allocation3 [shape = 's32[2]{0}', space=sflag, size = 0x8, scoped, tag = 'scoped memory for tpu_custom_call.1']
    #allocation4 [shape = 's32[2]{0}', space=sflag, size = 0x8, scoped, tag = 'scoped memory for tpu_custom_call.1']
    #allocation5 [shape = 'u8[65536]{0}', space=vmem, size = 0x10000, scoped, tag = 'input window, operand 1, single buffered']
    #allocation6 [shape = 's32[1]{0}', space=sflag, size = 0x4, scoped, tag = 'scoped memory for tpu_custom_call.1']
    #allocation7 [shape = 'u8[65536]{0}', space=vmem, size = 0x10000, scoped, tag = 'output window, operand 0']
    %8 = vsyncpa [#allocation3], 0
    %s9 = scalar_lea.sflag [#allocation3], 1
    %10 = vsyncpa %s9, 0
    %11 = vsyncpa [#allocation6], 0
    %12 = vsyncpa [#allocation4], 0
    %s13 = scalar_lea.sflag [#allocation4], 1
    %14 = vsyncpa %s13, 0
    loop: start=0, step=1, limit=4
    $region2: #{tpu_custom_call.1} parent=1 // loop_pre_header
      _
    $region3: #{tpu_custom_call.1} parent=1 // loop_header
      %s16 = sphi 0, %s20
      %p17 = scmp.ge.s32.totalorder %s16, 4
      %s23 = sphi 0, %s35
      %s24 = sphi 0, %s31
      %s25 = sphi 0, %s23
      %s26 = sphi 0, %s24
      %s27 = sphi 0, %s25
      %s28 = sphi 0, %s26
      %s38 = sphi 0, %s40
      %s41 = sphi 0, %s38
      %s42 = sphi 0, %s41
      %s58 = sphi 0, %s42
      %s64 = sphi 0, %s66
      %s67 = sphi 0, %s64
      %s68 = sphi 0, %s67
      %s84 = sphi 0, %s68
      %s90 = sphi 0, %s92
      %s93 = sphi 0, %s90
      %s94 = sphi 0, %s93
      %s110 = sphi 0, %s94
      %s118 = sphi 0, %s120
      %s121 = sphi 0, %s118
      %s122 = sphi 0, %s121
      %s138 = sphi 0, %s122
    $region4: #{tpu_custom_call.1} parent=1 // loop_header_branch
      %19 = sbr.rel (%p17) target = $region8
    $region5: #{tpu_custom_call.1} parent=1 // loop_body
      %s21 = ssub.s32 %s16, 1
      %s22 = ssub.s32 %s16, 2
      %s29 = sadd.s32 1, %s24
      %p30 = scmp.ge.s32.totalorder %s29, 1
      %s31 = scalar_select %p30, 0, %s29
      %s32 = sadd.s32 1, %s23
      %s33 = scalar_select %p30, %s32, %s23
      %p34 = scmp.ge.s32.totalorder %s33, 2
      %s35 = scalar_select %p34, 0, %s33
      %s36 = ssub.s32 %s23, %s35
      %p37 = scmp.eq.s32.totalorder %s36, 0
      %s39 = sadd.s32 %s38, 1
      %s40 = scalar_select %p37, %s38, %s39
      %p43 = pneg %p37
      %p44 = scmp.eq.s32.totalorder %s16, 1
      %p45 = por %p43, %p44
      %p46 = scmp.ne.s32.totalorder %s38, %s41
      %p47 = scmp.eq.s32.totalorder %s16, 0
      %p48 = por %p46, %p47
      %p49 = scmp.ne.s32.totalorder %s38, %s41
      %p50 = scmp.eq.s32.totalorder %s21, 1
      %p51 = por %p49, %p50
      %p52 = scmp.ne.s32.totalorder %s41, %s42
      %p53 = scmp.eq.s32.totalorder %s21, 0
      %p54 = por %p52, %p53
      %p55 = scmp.ne.s32.totalorder %s41, %s42
      %p56 = scmp.eq.s32.totalorder %s22, 1
      %p57 = por %p55, %p56
      %p59 = scmp.ne.s32.totalorder %s42, %s58
      %p60 = scmp.eq.s32.totalorder %s22, 0
      %p61 = por %p59, %p60
      %s62 = ssub.s32 %s24, %s31
      %p63 = scmp.eq.s32.totalorder %s62, 0
      %s65 = sadd.s32 %s64, 1
      %s66 = scalar_select %p63, %s64, %s65
      %p69 = pneg %p63
      %p70 = scmp.eq.s32.totalorder %s16, 1
      %p71 = por %p69, %p70
      %p72 = scmp.ne.s32.totalorder %s64, %s67
      %p73 = scmp.eq.s32.totalorder %s16, 0
      %p74 = por %p72, %p73
      %p75 = scmp.ne.s32.totalorder %s64, %s67
      %p76 = scmp.eq.s32.totalorder %s21, 1
      %p77 = por %p75, %p76
      %p78 = scmp.ne.s32.totalorder %s67, %s68
      %p79 = scmp.eq.s32.totalorder %s21, 0
      %p80 = por %p78, %p79
      %p81 = scmp.ne.s32.totalorder %s67, %s68
      %p82 = scmp.eq.s32.totalorder %s22, 1
      %p83 = por %p81, %p82
      %p85 = scmp.ne.s32.totalorder %s68, %s84
      %p86 = scmp.eq.s32.totalorder %s22, 0
      %p87 = por %p85, %p86
      %s88 = ssub.s32 %s24, %s31
      %p89 = scmp.eq.s32.totalorder %s88, 0
      %s91 = sadd.s32 %s90, 1
      %s92 = scalar_select %p89, %s90, %s91
      %p95 = pneg %p89
      %p96 = scmp.eq.s32.totalorder %s16, 1
      %p97 = por %p95, %p96
      %p98 = scmp.ne.s32.totalorder %s90, %s93
      %p99 = scmp.eq.s32.totalorder %s16, 0
      %p100 = por %p98, %p99
      %p101 = scmp.ne.s32.totalorder %s90, %s93
      %p102 = scmp.eq.s32.totalorder %s21, 1
      %p103 = por %p101, %p102
      %p104 = scmp.ne.s32.totalorder %s93, %s94
      %p105 = scmp.eq.s32.totalorder %s21, 0
      %p106 = por %p104, %p105
      %p107 = scmp.ne.s32.totalorder %s93, %s94
      %p108 = scmp.eq.s32.totalorder %s22, 1
      %p109 = por %p107, %p108
      %p111 = scmp.ne.s32.totalorder %s94, %s110
      %p112 = scmp.eq.s32.totalorder %s22, 0
      %p113 = por %p111, %p112
      %s114 = ssub.s32 %s23, %s35
      %s115 = ssub.s32 %s24, %s31
      %s116 = sor.u32 %s114, %s115
      %p117 = scmp.eq.s32.totalorder %s116, 0
      %s119 = sadd.s32 %s118, 1
      %s120 = scalar_select %p117, %s118, %s119
      %p123 = pneg %p117
      %p124 = scmp.eq.s32.totalorder %s16, 1
      %p125 = por %p123, %p124
      %p126 = scmp.ne.s32.totalorder %s118, %s121
      %p127 = scmp.eq.s32.totalorder %s16, 0
      %p128 = por %p126, %p127
      %p129 = scmp.ne.s32.totalorder %s118, %s121
      %p130 = scmp.eq.s32.totalorder %s21, 1
      %p131 = por %p129, %p130
      %p132 = scmp.ne.s32.totalorder %s121, %s122
      %p133 = scmp.eq.s32.totalorder %s21, 0
      %p134 = por %p132, %p133
      %p135 = scmp.ne.s32.totalorder %s121, %s122
      %p136 = scmp.eq.s32.totalorder %s22, 1
      %p137 = por %p135, %p136
      %p139 = scmp.ne.s32.totalorder %s122, %s138
      %p140 = scmp.eq.s32.totalorder %s22, 0
      %p141 = por %p139, %p140
      %p142 = scmp.le.s32.totalorder 1, %s16
      %p143 = scmp.lt.s32.totalorder %s16, 3
      %p144 = pnand %p142, %p143
      %p145 = pneg %p144
      // Predicated region
      $region9: #{tpu_custom_call.1} parent=5 // pred_check
        _
      $region10: #{tpu_custom_call.1} parent=5 // pred_check_branch
        %147 = sbr.rel (%p144) target = $region12
      $region11: #{tpu_custom_call.1} parent=5 // pred_region
        %s148 = ssub.s32 %s16, 1
        // Predicated region
        $region13: #{tpu_custom_call.1} parent=11 // pred_check
          %p149 = pneg %p80
        $region14: #{tpu_custom_call.1} parent=11 // pred_check_branch
          %151 = sbr.rel (%p149) target = $region16
        $region15: #{tpu_custom_call.1} parent=11 // pred_region
          %s153 = ssub.s32 2048, 2048
          %154 = vsyncadd [#allocation6], %s153
          %s155 = smul.addr %s26, 64
          %s156 = scalar_lea.hbm %s1, %s155
          %s157 = sshll.u32 [#allocation5], 4
          %s158 = int_to_ptr.vmem [resolvable:$true] %s157
          %163 = dma.hbm_to_vmem [thread:$0]  %s156, 2048, %s158, [#allocation6], 64, 64, 4
        $region16: #{tpu_custom_call.1} parent=11 // pred_fallthru
          _
        // Predicated region
        $region17: #{tpu_custom_call.1} parent=11 // pred_check
          %p164 = pneg %p106
        $region18: #{tpu_custom_call.1} parent=11 // pred_check_branch
          %166 = sbr.rel (%p164) target = $region20
        $region19: #{tpu_custom_call.1} parent=11 // pred_region
          %p167 = scmp.lt.s32.totalorder %s26, 0
          %s168 = scalar_select %p167, %s26, 0
          %s169 = scalar_lea.vmem %s2, %s168
        $region20: #{tpu_custom_call.1} parent=11 // pred_fallthru
          _
      $region12: #{tpu_custom_call.1} parent=5 // pred_fallthru
        _
      %p170 = scmp.lt.s32.totalorder %s16, 2
      // Predicated region
      $region21: #{tpu_custom_call.1} parent=5 // pred_check
        %p171 = pneg %p170
      $region22: #{tpu_custom_call.1} parent=5 // pred_check_branch
        %173 = sbr.rel (%p171) target = $region24
      $region23: #{tpu_custom_call.1} parent=5 // pred_region
        // Predicated region
        $region25: #{tpu_custom_call.1} parent=23 // pred_check
          %p174 = pneg %p48
        $region26: #{tpu_custom_call.1} parent=23 // pred_check_branch
          %176 = sbr.rel (%p174) target = $region28
        $region27: #{tpu_custom_call.1} parent=23 // pred_region
          %s177 = sand.u32 %s38, 1
          %s178 = scalar_lea.sflag [#allocation3], %s177
          %s179 = sand.u32 %s38, 1
          %s180 = smul.addr %s179, 64
          %s181 = scalar_lea.vmem [#allocation2], %s180
          %s182 = smul.u32 8, %s23
          %s184 = ssub.s32 1024, 1024
          %185 = vsyncadd %s178, %s184
          %s186 = smul.addr %s182, 2
          %s187 = smul.addr %s186, 64
          %s188 = scalar_lea.hbm %s0, %s187
          %s189 = sshll.u32 %s181, 4
          %s190 = int_to_ptr.vmem [resolvable:$true] %s189
          %195 = dma.hbm_to_vmem [thread:$0]  %s188, 1024, %s190, %s178, 128, 128, 8
        $region28: #{tpu_custom_call.1} parent=23 // pred_fallthru
          _
      $region24: #{tpu_custom_call.1} parent=5 // pred_fallthru
        _
      %p196 = scmp.le.s32.totalorder 1, %s16
      %p197 = scmp.lt.s32.totalorder %s16, 3
      %p198 = pnand %p196, %p197
      %p199 = pneg %p198
      // Predicated region
      $region29: #{tpu_custom_call.1} parent=5 // pred_check
        _
      $region30: #{tpu_custom_call.1} parent=5 // pred_check_branch
        %201 = sbr.rel (%p198) target = $region32
      $region31: #{tpu_custom_call.1} parent=5 // pred_region
        %s202 = ssub.s32 %s16, 1
        %s203 = sand.u32 %s41, 1
        %s204 = scalar_lea.sflag [#allocation3], %s203
        %s205 = sand.u32 %s41, 1
        %s206 = smul.addr %s205, 64
        %s207 = scalar_lea.vmem [#allocation2], %s206
        // Predicated region
        $region33: #{tpu_custom_call.1} parent=31 // pred_check
          %p208 = pneg %p54
        $region34: #{tpu_custom_call.1} parent=31 // pred_check_branch
          %210 = sbr.rel (%p208) target = $region36
        $region35: #{tpu_custom_call.1} parent=31 // pred_region
          %211 = dma.done %s204, 1024
        $region36: #{tpu_custom_call.1} parent=31 // pred_fallthru
          _
        // Predicated region
        $region37: #{tpu_custom_call.1} parent=31 // pred_check
          %p212 = pneg %p80
        $region38: #{tpu_custom_call.1} parent=31 // pred_check_branch
          %214 = sbr.rel (%p212) target = $region40
        $region39: #{tpu_custom_call.1} parent=31 // pred_region
          %215 = dma.done [#allocation6], 2048
        $region40: #{tpu_custom_call.1} parent=31 // pred_fallthru
          _
        %s216 = sand.u32 %s41, 1
        %s217 = scalar_lea.sflag [#allocation3], %s216
        %s218 = sand.u32 %s41, 1
        %s219 = smul.addr %s218, 64
        %s220 = scalar_lea.vmem [#allocation2], %s219
        %p221 = pneg %p54
        %p222 = pneg %p51
        %p223 = pneg %p80
        %p224 = pneg %p77
        %p225 = scmp.lt.s32.totalorder %s26, 0
        %s226 = scalar_select %p225, %s26, 0
        %s227 = scalar_lea.vmem %s2, %s226
        %p228 = pneg %p106
        %p229 = pneg %p103
        %p230 = pneg %p134
        %p231 = pneg %p131
        %s232 = sand.u32 %s121, 1
        %s233 = scalar_lea.sflag [#allocation4], %s232
        %s234 = sand.u32 %s121, 1
        %s235 = smul.addr %s234, 64
        %s236 = scalar_lea.vmem [#allocation7], %s235
        %s237 = smul.u32 8, %s25
        %p238 = scmp.lt.s32.totalorder %s26, 0
        %s239 = scalar_select %p238, %s26, 0
        %s240 = scalar_lea.vmem %s2, %s239
        %s241 = smul.u32 8, %s25
        %v243 = vld [vmem:[%s207] sm:$0xff]
        %v244 = vld [vmem:[%s207 + $0x8] sm:$0xff]
        %v245 = vld [vmem:[%s207 + $0x10] sm:$0xff]
        %v246 = vld [vmem:[%s207 + $0x18] sm:$0xff]
        %v247 = vld [vmem:[%s207 + $0x20] sm:$0xff]
        %v248 = vld [vmem:[%s207 + $0x28] sm:$0xff]
        %v249 = vld [vmem:[%s207 + $0x30] sm:$0xff]
        %v250 = vld [vmem:[%s207 + $0x38] sm:$0xff]
        %v251 = vld [vmem:[#allocation5] sm:$0xf]
        %v252 = vld [vmem:[#allocation5 + $0x4] sm:$0xf]
        %v253 = vld [vmem:[#allocation5 + $0x8] sm:$0xf]
        %v254 = vld [vmem:[#allocation5 + $0xc] sm:$0xf]
        %v255 = vld [vmem:[#allocation5 + $0x10] sm:$0xf]
        %v256 = vld [vmem:[#allocation5 + $0x14] sm:$0xf]
        %v257 = vld [vmem:[#allocation5 + $0x18] sm:$0xf]
        %v258 = vld [vmem:[#allocation5 + $0x1c] sm:$0xf]
        %v259 = vld [vmem:[#allocation5 + $0x20] sm:$0xf]
        %v260 = vld [vmem:[#allocation5 + $0x24] sm:$0xf]
        %v261 = vld [vmem:[#allocation5 + $0x28] sm:$0xf]
        %v262 = vld [vmem:[#allocation5 + $0x2c] sm:$0xf]
        %v263 = vld [vmem:[#allocation5 + $0x30] sm:$0xf]
        %v264 = vld [vmem:[#allocation5 + $0x34] sm:$0xf]
        %v265 = vld [vmem:[#allocation5 + $0x38] sm:$0xf]
        %v266 = vld [vmem:[#allocation5 + $0x3c] sm:$0xf]
        %v267 = vld [vmem:[#allocation5 + $0x40] sm:$0xf]
        %v268 = vld [vmem:[#allocation5 + $0x44] sm:$0xf]
        %v269 = vld [vmem:[#allocation5 + $0x48] sm:$0xf]
        %v270 = vld [vmem:[#allocation5 + $0x4c] sm:$0xf]
        %v271 = vld [vmem:[#allocation5 + $0x50] sm:$0xf]
        %v272 = vld [vmem:[#allocation5 + $0x54] sm:$0xf]
        %v273 = vld [vmem:[#allocation5 + $0x58] sm:$0xf]
        %v274 = vld [vmem:[#allocation5 + $0x5c] sm:$0xf]
        %v275 = vld [vmem:[#allocation5 + $0x60] sm:$0xf]
        %v276 = vld [vmem:[#allocation5 + $0x64] sm:$0xf]
        %v277 = vld [vmem:[#allocation5 + $0x68] sm:$0xf]
        %v278 = vld [vmem:[#allocation5 + $0x6c] sm:$0xf]
        %v279 = vld [vmem:[#allocation5 + $0x70] sm:$0xf]
        %v280 = vld [vmem:[#allocation5 + $0x74] sm:$0xf]
        %v281 = vld [vmem:[#allocation5 + $0x78] sm:$0xf]
        %v282 = vld [vmem:[#allocation5 + $0x7c] sm:$0xf]
        %v283 = vld [vmem:[%s240] sm:$0x1]
        %v285 = vlaneseq
        %v286 = vshrl.u32 %v285, 7
        %v287 = vsub.s32 0, %v286
        %v288 = vrot.slane %v283, %v287
        %v298 = vunpack.c.l.b16 %v243
        %v299 = vunpack.c.h.b16 %v243
        %v300 = vunpack.c.l.b16 %v244
        %v301 = vunpack.c.h.b16 %v244
        %v302 = vunpack.c.l.b16 %v245
        %v303 = vunpack.c.h.b16 %v245
        %v304 = vunpack.c.l.b16 %v246
        %v305 = vunpack.c.h.b16 %v246
        %v306 = vunpack.c.l.b16 %v247
        %v307 = vunpack.c.h.b16 %v247
        %v308 = vunpack.c.l.b16 %v248
        %v309 = vunpack.c.h.b16 %v248
        %v310 = vunpack.c.l.b16 %v249
        %v311 = vunpack.c.h.b16 %v249
        %v312 = vunpack.c.l.b16 %v250
        %v313 = vunpack.c.h.b16 %v250
        %v314 = vpack.c.b16 %v300, %v298
        %v315 = vpack.c.b16 %v301, %v299
        %v316 = vpack.c.b16 %v304, %v302
        %v317 = vpack.c.b16 %v305, %v303
        %v318 = vpack.c.b16 %v308, %v306
        %v319 = vpack.c.b16 %v309, %v307
        %v320 = vpack.c.b16 %v312, %v310
        %v321 = vpack.c.b16 %v313, %v311
        %v362 = vunpack.c.l.b16 %v251
        %v363 = vunpack.c.l.b16 %v252
        %v364 = vunpack.c.l.b16 %v253
        %v365 = vunpack.c.l.b16 %v254
        %v366 = vunpack.c.l.b16 %v255
        %v367 = vunpack.c.l.b16 %v256
        %v368 = vunpack.c.l.b16 %v257
        %v369 = vunpack.c.l.b16 %v258
        %v370 = vunpack.c.l.b16 %v259
        %v371 = vunpack.c.l.b16 %v260
        %v372 = vunpack.c.l.b16 %v261
        %v373 = vunpack.c.l.b16 %v262
        %v374 = vunpack.c.l.b16 %v263
        %v375 = vunpack.c.l.b16 %v264
        %v376 = vunpack.c.l.b16 %v265
        %v377 = vunpack.c.l.b16 %v266
        %v378 = vunpack.c.l.b16 %v267
        %v379 = vunpack.c.l.b16 %v268
        %v380 = vunpack.c.l.b16 %v269
        %v381 = vunpack.c.l.b16 %v270
        %v382 = vunpack.c.l.b16 %v271
        %v383 = vunpack.c.l.b16 %v272
        %v384 = vunpack.c.l.b16 %v273
        %v385 = vunpack.c.l.b16 %v274
        %v386 = vunpack.c.l.b16 %v275
        %v387 = vunpack.c.l.b16 %v276
        %v388 = vunpack.c.l.b16 %v277
        %v389 = vunpack.c.l.b16 %v278
        %v390 = vunpack.c.l.b16 %v279
        %v391 = vunpack.c.l.b16 %v280
        %v392 = vunpack.c.l.b16 %v281
        %v393 = vunpack.c.l.b16 %v282
        %v394 = vpack.c.b16 %v363, %v362
        %v395 = vpack.c.b16 %v365, %v364
        %v396 = vpack.c.b16 %v367, %v366
        %v397 = vpack.c.b16 %v369, %v368
        %v398 = vpack.c.b16 %v371, %v370
        %v399 = vpack.c.b16 %v373, %v372
        %v400 = vpack.c.b16 %v375, %v374
        %v401 = vpack.c.b16 %v377, %v376
        %v402 = vpack.c.b16 %v379, %v378
        %v403 = vpack.c.b16 %v381, %v380
        %v404 = vpack.c.b16 %v383, %v382
        %v405 = vpack.c.b16 %v385, %v384
        %v406 = vpack.c.b16 %v387, %v386
        %v407 = vpack.c.b16 %v389, %v388
        %v408 = vpack.c.b16 %v391, %v390
        %v409 = vpack.c.b16 %v393, %v392
        %426 = vmatprep.subr.bf16.mxu0 0
        %427 = vmatpush1.bf16.msra.mxu0 %v394
        %428 = vmatprep.subr.bf16.mxu0 0
        %429 = vmatpush1.bf16.msra.mxu0 %v395
        %430 = vmatprep.subr.bf16.mxu0 0
        %431 = vmatpush1.bf16.msra.mxu0 %v396
        %432 = vmatprep.subr.bf16.mxu0 0
        %433 = vmatpush1.bf16.msra.mxu0 %v397
        %434 = vmatprep.subr.bf16.mxu0 0
        %435 = vmatpush1.bf16.msra.mxu0 %v398
        %436 = vmatprep.subr.bf16.mxu0 0
        %437 = vmatpush1.bf16.msra.mxu0 %v399
        %438 = vmatprep.subr.bf16.mxu0 0
        %439 = vmatpush1.bf16.msra.mxu0 %v400
        %440 = vmatprep.subr.bf16.mxu0 0
        %441 = vmatpush1.bf16.msra.mxu0 %v401
        %442 = vmatprep.subr.bf16.mxu0 0
        %443 = vmatpush1.bf16.msra.mxu0 %v402
        %444 = vmatprep.subr.bf16.mxu0 0
        %445 = vmatpush1.bf16.msra.mxu0 %v403
        %446 = vmatprep.subr.bf16.mxu0 0
        %447 = vmatpush1.bf16.msra.mxu0 %v404
        %448 = vmatprep.subr.bf16.mxu0 0
        %449 = vmatpush1.bf16.msra.mxu0 %v405
        %450 = vmatprep.subr.bf16.mxu0 0
        %451 = vmatpush1.bf16.msra.mxu0 %v406
        %452 = vmatprep.subr.bf16.mxu0 0
        %453 = vmatpush1.bf16.msra.mxu0 %v407
        %454 = vmatprep.subr.bf16.mxu0 0
        %455 = vmatpush1.bf16.msra.mxu0 %v408
        %456 = vmatprep.subr.bf16.mxu0 0
        %457 = vmatpush1.bf16.msra.mxu0 %v409
        %458 = vmatprep.mubr.bf16.mxu0 %v315
        %459 = vmatmul.mubr.bf16.gmra.mrb[0].mxu0 %v314
        %v460 = vpop.f32.mrb[0].mxu0
        %v461 = vadd.f32 %v288, %v460
        %v462 = vpop.f32.mrb[0].mxu0
        %v463 = vpop.f32.mrb[0].mxu0
        %v464 = vadd.f32 %v288, %v463
        %v465 = vpop.f32.mrb[0].mxu0
        %466 = vmatprep.mubr.bf16.mxu0 %v317
        %467 = vmatmul.mubr.bf16.gmra.mrb[0].mxu0 %v316
        %v468 = vpop.f32.mrb[0].mxu0
        %v469 = vadd.f32 %v288, %v468
        %v470 = vpop.f32.mrb[0].mxu0
        %v471 = vpop.f32.mrb[0].mxu0
        %v472 = vadd.f32 %v288, %v471
        %v473 = vpop.f32.mrb[0].mxu0
        %474 = vmatprep.mubr.bf16.mxu0 %v319
        %475 = vmatmul.mubr.bf16.gmra.mrb[0].mxu0 %v318
        %v476 = vpop.f32.mrb[0].mxu0
        %v477 = vadd.f32 %v288, %v476
        %v478 = vpop.f32.mrb[0].mxu0
        %v479 = vpop.f32.mrb[0].mxu0
        %v480 = vadd.f32 %v288, %v479
        %v481 = vpop.f32.mrb[0].mxu0
        %482 = vmatprep.mubr.bf16.mxu0 %v321
        %483 = vmatmul.mubr.bf16.gmra.mrb[0].mxu0 %v320
        %v484 = vpop.f32.mrb[0].mxu0
        %v485 = vadd.f32 %v288, %v484
        %v486 = vpop.f32.mrb[0].mxu0
        %v487 = vpop.f32.mrb[0].mxu0
        %v488 = vadd.f32 %v288, %v487
        %v489 = vpop.f32.mrb[0].mxu0
        %490 = vdwg.mxu0
        %491 = vst [vmem:[%s236] sm:$0xff] %v461
        %492 = vst [vmem:[%s236 + $0x8] sm:$0xff] %v464
        %493 = vst [vmem:[%s236 + $0x10] sm:$0xff] %v469
        %494 = vst [vmem:[%s236 + $0x18] sm:$0xff] %v472
        %495 = vst [vmem:[%s236 + $0x20] sm:$0xff] %v477
        %496 = vst [vmem:[%s236 + $0x28] sm:$0xff] %v480
        %497 = vst [vmem:[%s236 + $0x30] sm:$0xff] %v485
        %498 = vst [vmem:[%s236 + $0x38] sm:$0xff] %v488
        %s499 = sand.u32 %s121, 1
        %s500 = scalar_lea.sflag [#allocation4], %s499
        %s501 = sand.u32 %s121, 1
        %s502 = smul.addr %s501, 64
        %s503 = scalar_lea.vmem [#allocation7], %s502
        // Predicated region
        $region41: #{tpu_custom_call.1} parent=31 // pred_check
          %p504 = pneg %p131
        $region42: #{tpu_custom_call.1} parent=31 // pred_check_branch
          %506 = sbr.rel (%p504) target = $region44
        $region43: #{tpu_custom_call.1} parent=31 // pred_region
          %s507 = smul.u32 8, %s25
          %s509 = ssub.s32 1024, 1024
          %510 = vsyncadd %s500, %s509
          %s511 = sadd.s32 %s26, %s507
          %s512 = smul.addr %s511, 128
          %s513 = scalar_lea.hbm %s3, %s512
          %s514 = sshll.u32 %s503, 4
          %s515 = int_to_ptr.vmem [resolvable:$true] %s514
          %520 = dma.vmem_to_hbm [thread:$0]  %s515, 1024, %s513, %s500, 128, 128, 8
        $region44: #{tpu_custom_call.1} parent=31 // pred_fallthru
          _
      $region32: #{tpu_custom_call.1} parent=5 // pred_fallthru
        _
      %p521 = scmp.le.s32.totalorder 2, %s16
      // Predicated region
      $region45: #{tpu_custom_call.1} parent=5 // pred_check
        %p522 = pneg %p521
      $region46: #{tpu_custom_call.1} parent=5 // pred_check_branch
        %524 = sbr.rel (%p522) target = $region48
      $region47: #{tpu_custom_call.1} parent=5 // pred_region
        %s525 = ssub.s32 %s16, 2
        // Predicated region
        $region49: #{tpu_custom_call.1} parent=47 // pred_check
          %p526 = pneg %p137
        $region50: #{tpu_custom_call.1} parent=47 // pred_check_branch
          %528 = sbr.rel (%p526) target = $region52
        $region51: #{tpu_custom_call.1} parent=47 // pred_region
          %s529 = sand.u32 %s122, 1
          %s530 = scalar_lea.sflag [#allocation4], %s529
          %s531 = sand.u32 %s122, 1
          %s532 = smul.addr %s531, 64
          %s533 = scalar_lea.vmem [#allocation7], %s532
          %534 = dma.done %s530, 1024
        $region52: #{tpu_custom_call.1} parent=47 // pred_fallthru
          _
      $region48: #{tpu_custom_call.1} parent=5 // pred_fallthru
        _
    $region6: #{tpu_custom_call.1} parent=1 // loop_footer
      %s20 = sadd.s32 1, %s16
    $region7: #{tpu_custom_call.1} parent=1 // loop_footer_branch
      %15 = sbr.rel target = $region3
    $region8: #{tpu_custom_call.1} parent=1 // loop_exit
      _
    %535 = vsyncpa [#allocation3], 1
    %s536 = scalar_lea.sflag [#allocation3], 1
    %537 = vsyncpa %s536, 1
    %538 = vsyncpa [#allocation6], 1
    %539 = vsyncpa [#allocation4], 1
    %s540 = scalar_lea.sflag [#allocation4], 1
    %541 = vsyncpa %s540, 1

</llo_original>
